<compile_context>
chip_gen: v7x
topology: tpu7x:2x2x1
jax: 0.10.0
libtpu: 0.0.40
codegen_flags: <defaults>
</compile_context>

<pallas_src>
import functools
import math

import jax
import jax.numpy as jnp
from jax import lax
from jax.experimental import pallas as pl
from jax.experimental.pallas import tpu as pltpu


def mha_kernel(x_ref, wqkv_ref, wp_ref, bp_ref, o_ref, oacc_ref,
               *, num_heads, head_dim):
    x = x_ref[0]            # (N, C)
    wqkv = wqkv_ref[...]    # (C, 3C)  pre-transposed; Q-part pre-scaled
    wp = wp_ref[...]        # (C, C)   pre-transposed (w_proj.T)
    bp = bp_ref[...]        # (1, C)

    C = x.shape[-1]

    # Full-width QKV projection: a single (N, C) x (C, 3C) MXU GEMM for all
    # heads (qkv_bias=False in the module). Scale is already folded into Wq.
    qkv = jnp.dot(x, wqkv, preferred_element_type=jnp.float32)   # (N, 3C)

    # Per-head attention. num_heads is small and static -> unrolled with
    # static lane slices (no dynamic lane shifts, no transposes).
    for h in range(num_heads):
        lo = h * head_dim
        q = qkv[:, lo:lo + head_dim]                          # (N, hd), scaled
        k = qkv[:, C + lo:C + lo + head_dim]                  # (N, hd)
        v = qkv[:, 2 * C + lo:2 * C + lo + head_dim]          # (N, hd)

        # scores = q @ k^T without an explicit transpose: contract last axes.
        s = lax.dot_general(q, k, (((1,), (1,)), ((), ())),
                            preferred_element_type=jnp.float32)  # (N, N)

        # Numerically-stable softmax; denominator reciprocal goes to the EUP.
        s = s - jnp.max(s, axis=-1, keepdims=True)
        p = jnp.exp(s)
        p = p * pl.reciprocal(jnp.sum(p, axis=-1, keepdims=True), approx=True)
        # attn_drop has p = 0.0 -> identity.

        o_h = jnp.dot(p, v, preferred_element_type=jnp.float32)  # (N, hd)
        oacc_ref[:, lo:lo + head_dim] = o_h

    # Single full-width output projection (N, C) x (C, C) + bias, written to
    # the output block exactly once. proj_drop p = 0.0 -> identity.
    out = jnp.dot(oacc_ref[...], wp, preferred_element_type=jnp.float32) + bp
    o_ref[0] = out.astype(o_ref.dtype)


def multi_head_attention(x, w_qkv, w_proj, b_proj, num_heads):
    B, N, C = x.shape
    hd = C // num_heads
    scale = hd ** (-0.5)

    # Pre-transpose weights to (in, out) layout so the kernel contracts on the
    # last axis of x / o with no in-kernel transposes, and fold the softmax
    # scale into the Q rows of the QKV weight.
    wqkv_scaled = jnp.concatenate([w_qkv[:C] * scale, w_qkv[C:]], axis=0)
    wqkv_t = wqkv_scaled.T              # (C, 3C)
    wp_t = w_proj.T                     # (C, C)
    bp = b_proj.reshape(1, C)

    kernel = functools.partial(mha_kernel, num_heads=num_heads, head_dim=hd)

    # TODO(synk): for real ViT shapes (e.g. N~256, C=768) set
    # vmem_limit_bytes explicitly and add a query-tile / flash-style KV loop
    # for long sequences (N >~ 2048) so the (N, N) scores never exceed VMEM.
    return pl.pallas_call(
        kernel,
        out_shape=jax.ShapeDtypeStruct((B, N, C), x.dtype),
        grid_spec=pltpu.PrefetchScalarGridSpec(
            num_scalar_prefetch=0,
            grid=(B,),
            in_specs=[
                pl.BlockSpec((1, N, C), lambda b: (b, 0, 0)),   # x
                pl.BlockSpec((C, 3 * C), lambda b: (0, 0)),     # W_qkv^T (resident)
                pl.BlockSpec((C, C), lambda b: (0, 0)),         # W_proj^T (resident)
                pl.BlockSpec((1, C), lambda b: (0, 0)),         # proj bias
            ],
            out_specs=pl.BlockSpec((1, N, C), lambda b: (b, 0, 0)),
            scratch_shapes=[pltpu.VMEM((N, C), jnp.float32)],   # concat head outs
        ),
        compiler_params=pltpu.CompilerParams(
            dimension_semantics=("parallel",)),
    )(x, wqkv_t, wp_t, bp)


def mha_reference(x, w_qkv, w_proj, b_proj, num_heads):
    # Pure-JAX mirror of the PyTorch forward (dropout p=0.0 -> identity).
    B, N, C = x.shape
    hd = C // num_heads
    qkv = (x @ w_qkv.T).reshape(B, N, 3, num_heads, hd).transpose(2, 0, 3, 1, 4)
    q, k, v = qkv[0], qkv[1], qkv[2]
    attn = (q @ jnp.swapaxes(k, -2, -1)) * (hd ** (-0.5))
    attn = jax.nn.softmax(attn, axis=-1)
    o = (attn @ v).transpose(0, 2, 1, 3).reshape(B, N, C)
    return o @ w_proj.T + b_proj


if __name__ == "__main__":
    B, N, C = 2, 8, 32
    num_heads = 4  # head_dim = 8

    key = jax.random.PRNGKey(0)
    kx, kqkv, kp, kb = jax.random.split(key, 4)

    x = jax.random.normal(kx, (B, N, C), dtype=jnp.float32)

    # Deterministic "Linear"-style init (shapes match nn.Linear: (out, in)).
    bound_qkv = 1.0 / math.sqrt(C)
    w_qkv = jax.random.uniform(kqkv, (3 * C, C), jnp.float32,
                               -bound_qkv, bound_qkv)
    w_proj = jax.random.uniform(kp, (C, C), jnp.float32,
                                -bound_qkv, bound_qkv)
    b_proj = jax.random.uniform(kb, (C,), jnp.float32,
                                -bound_qkv, bound_qkv)

    out = multi_head_attention(x, w_qkv, w_proj, b_proj, num_heads)
    out = jax.block_until_ready(out)

    ref = mha_reference(x, w_qkv, w_proj, b_proj, num_heads)
    assert out.shape == (B, N, C)
    # Tolerance allows for the EUP approximate reciprocal in the softmax.
    assert jnp.allclose(out, ref, atol=1e-3, rtol=1e-3), "mismatch vs reference"

    print("KERNEL_OK")
</pallas_src>

<mosaic_0001>
module attributes {stable_mosaic.version = 11 : i64} {
  func.func @mha_kernel(%arg0: i32, %arg1: memref<1x8x32xf32, #tpu.memory_space<vmem>>, %arg2: memref<32x96xf32, #tpu.memory_space<vmem>>, %arg3: memref<32x32xf32, #tpu.memory_space<vmem>>, %arg4: memref<1x32xf32, #tpu.memory_space<vmem>>, %arg5: memref<1x8x32xf32, #tpu.memory_space<vmem>>, %arg6: memref<8x32xf32, #tpu.memory_space<vmem>>) attributes {dimension_semantics = [#tpu.dimension_semantics<parallel>], iteration_bounds = array<i64: 2>, scalar_prefetch = 0 : i64, scratch_operands = 1 : i64, tpu.core_type = #tpu.core_type<tc>, window_params = [{transform_indices = @transform_0, window_bounds = array<i64: 1, 8, 32>}, {pipeline_mode = #tpu.pipeline_mode<synchronous>, transform_indices = @transform_1, window_bounds = array<i64: 32, 96>}, {pipeline_mode = #tpu.pipeline_mode<synchronous>, transform_indices = @transform_2, window_bounds = array<i64: 32, 32>}, {pipeline_mode = #tpu.pipeline_mode<synchronous>, transform_indices = @transform_3, window_bounds = array<i64: 1, 32>}, {transform_indices = @transform_4, window_bounds = array<i64: 1, 8, 32>}]} {
    %c0 = arith.constant 0 : index
    %c0_0 = arith.constant 0 : index
    %c0_1 = arith.constant 0 : index
    %0 = vector.load %arg1[%c0, %c0_0, %c0_1] : memref<1x8x32xf32, #tpu.memory_space<vmem>>, vector<1x8x32xf32>
    %1 = vector.shape_cast %0 : vector<1x8x32xf32> to vector<8x32xf32>
    %c0_2 = arith.constant 0 : index
    %c0_3 = arith.constant 0 : index
    %2 = vector.load %arg2[%c0_2, %c0_3] : memref<32x96xf32, #tpu.memory_space<vmem>>, vector<32x96xf32>
    %c0_4 = arith.constant 0 : index
    %c0_5 = arith.constant 0 : index
    %3 = vector.load %arg3[%c0_4, %c0_5] : memref<32x32xf32, #tpu.memory_space<vmem>>, vector<32x32xf32>
    %c0_6 = arith.constant 0 : index
    %c0_7 = arith.constant 0 : index
    %4 = vector.load %arg4[%c0_6, %c0_7] : memref<1x32xf32, #tpu.memory_space<vmem>>, vector<1x32xf32>
    %cst = arith.constant dense<0.000000e+00> : vector<8x96xf32>
    %5 = tpu.matmul %1, %2, %cst {dimension_numbers = #tpu.dot_dimension_numbers<[1], [0], [0], [1], [0, 0, 1, 1], [], []>} : vector<8x32xf32>, vector<32x96xf32>, vector<8x96xf32> -> vector<8x96xf32>
    %6 = vector.extract_strided_slice %5 {offsets = [0, 0], sizes = [8, 8], strides = [1, 1]} : vector<8x96xf32> to vector<8x8xf32>
    %7 = vector.extract_strided_slice %5 {offsets = [0, 32], sizes = [8, 8], strides = [1, 1]} : vector<8x96xf32> to vector<8x8xf32>
    %8 = vector.extract_strided_slice %5 {offsets = [0, 64], sizes = [8, 8], strides = [1, 1]} : vector<8x96xf32> to vector<8x8xf32>
    %cst_8 = arith.constant dense<0.000000e+00> : vector<8x8xf32>
    %9 = tpu.matmul %6, %7, %cst_8 {dimension_numbers = #tpu.dot_dimension_numbers<[1], [1], [0], [0], [0, 0, 1, 0], [], []>} : vector<8x8xf32>, vector<8x8xf32>, vector<8x8xf32> -> vector<8x8xf32>
    %cst_9 = arith.constant dense<0xFF800000> : vector<8xf32>
    %10 = vector.multi_reduction <maximumf>, %9, %cst_9 [1] : vector<8x8xf32> to vector<8xf32>
    %11 = vector.shape_cast %10 : vector<8xf32> to vector<8x1xf32>
    %12 = vector.broadcast %11 : vector<8x1xf32> to vector<8x8xf32>
    %13 = arith.subf %9, %12 : vector<8x8xf32>
    %14 = math.exp %13 : vector<8x8xf32>
    %cst_10 = arith.constant dense<0.000000e+00> : vector<8xf32>
    %15 = vector.multi_reduction <add>, %14, %cst_10 [1] : vector<8x8xf32> to vector<8xf32>
    %16 = vector.shape_cast %15 : vector<8xf32> to vector<8x1xf32>
    %17 = tpu.reciprocal %16 {approx = true} : vector<8x1xf32> -> vector<8x1xf32>
    %18 = vector.broadcast %17 : vector<8x1xf32> to vector<8x8xf32>
    %19 = arith.mulf %14, %18 : vector<8x8xf32>
    %cst_11 = arith.constant dense<0.000000e+00> : vector<8x8xf32>
    %20 = tpu.matmul %19, %8, %cst_11 {dimension_numbers = #tpu.dot_dimension_numbers<[1], [0], [0], [1], [0, 0, 1, 1], [], []>} : vector<8x8xf32>, vector<8x8xf32>, vector<8x8xf32> -> vector<8x8xf32>
    %c0_12 = arith.constant 0 : index
    %c0_13 = arith.constant 0 : index
    %21 = vector.load %arg6[%c0_12, %c0_13] : memref<8x32xf32, #tpu.memory_space<vmem>>, vector<8x8xf32>
    tpu.vector_store %arg6[%c0_12, %c0_13], %20 {strides = array<i32>} : memref<8x32xf32, #tpu.memory_space<vmem>>, vector<8x8xf32>,
    %22 = vector.extract_strided_slice %5 {offsets = [0, 8], sizes = [8, 8], strides = [1, 1]} : vector<8x96xf32> to vector<8x8xf32>
    %23 = vector.extract_strided_slice %5 {offsets = [0, 40], sizes = [8, 8], strides = [1, 1]} : vector<8x96xf32> to vector<8x8xf32>
    %24 = vector.extract_strided_slice %5 {offsets = [0, 72], sizes = [8, 8], strides = [1, 1]} : vector<8x96xf32> to vector<8x8xf32>
    %cst_14 = arith.constant dense<0.000000e+00> : vector<8x8xf32>
    %25 = tpu.matmul %22, %23, %cst_14 {dimension_numbers = #tpu.dot_dimension_numbers<[1], [1], [0], [0], [0, 0, 1, 0], [], []>} : vector<8x8xf32>, vector<8x8xf32>, vector<8x8xf32> -> vector<8x8xf32>
    %cst_15 = arith.constant dense<0xFF800000> : vector<8xf32>
    %26 = vector.multi_reduction <maximumf>, %25, %cst_15 [1] : vector<8x8xf32> to vector<8xf32>
    %27 = vector.shape_cast %26 : vector<8xf32> to vector<8x1xf32>
    %28 = vector.broadcast %27 : vector<8x1xf32> to vector<8x8xf32>
    %29 = arith.subf %25, %28 : vector<8x8xf32>
    %30 = math.exp %29 : vector<8x8xf32>
    %cst_16 = arith.constant dense<0.000000e+00> : vector<8xf32>
    %31 = vector.multi_reduction <add>, %30, %cst_16 [1] : vector<8x8xf32> to vector<8xf32>
    %32 = vector.shape_cast %31 : vector<8xf32> to vector<8x1xf32>
    %33 = tpu.reciprocal %32 {approx = true} : vector<8x1xf32> -> vector<8x1xf32>
    %34 = vector.broadcast %33 : vector<8x1xf32> to vector<8x8xf32>
    %35 = arith.mulf %30, %34 : vector<8x8xf32>
    %cst_17 = arith.constant dense<0.000000e+00> : vector<8x8xf32>
    %36 = tpu.matmul %35, %24, %cst_17 {dimension_numbers = #tpu.dot_dimension_numbers<[1], [0], [0], [1], [0, 0, 1, 1], [], []>} : vector<8x8xf32>, vector<8x8xf32>, vector<8x8xf32> -> vector<8x8xf32>
    %c0_18 = arith.constant 0 : index
    %c8 = arith.constant 8 : index
    %37 = vector.load %arg6[%c0_18, %c8] : memref<8x32xf32, #tpu.memory_space<vmem>>, vector<8x8xf32>
    tpu.vector_store %arg6[%c0_18, %c8], %36 {strides = array<i32>} : memref<8x32xf32, #tpu.memory_space<vmem>>, vector<8x8xf32>,
    %38 = vector.extract_strided_slice %5 {offsets = [0, 16], sizes = [8, 8], strides = [1, 1]} : vector<8x96xf32> to vector<8x8xf32>
    %39 = vector.extract_strided_slice %5 {offsets = [0, 48], sizes = [8, 8], strides = [1, 1]} : vector<8x96xf32> to vector<8x8xf32>
    %40 = vector.extract_strided_slice %5 {offsets = [0, 80], sizes = [8, 8], strides = [1, 1]} : vector<8x96xf32> to vector<8x8xf32>
    %cst_19 = arith.constant dense<0.000000e+00> : vector<8x8xf32>
    %41 = tpu.matmul %38, %39, %cst_19 {dimension_numbers = #tpu.dot_dimension_numbers<[1], [1], [0], [0], [0, 0, 1, 0], [], []>} : vector<8x8xf32>, vector<8x8xf32>, vector<8x8xf32> -> vector<8x8xf32>
    %cst_20 = arith.constant dense<0xFF800000> : vector<8xf32>
    %42 = vector.multi_reduction <maximumf>, %41, %cst_20 [1] : vector<8x8xf32> to vector<8xf32>
    %43 = vector.shape_cast %42 : vector<8xf32> to vector<8x1xf32>
    %44 = vector.broadcast %43 : vector<8x1xf32> to vector<8x8xf32>
    %45 = arith.subf %41, %44 : vector<8x8xf32>
    %46 = math.exp %45 : vector<8x8xf32>
    %cst_21 = arith.constant dense<0.000000e+00> : vector<8xf32>
    %47 = vector.multi_reduction <add>, %46, %cst_21 [1] : vector<8x8xf32> to vector<8xf32>
    %48 = vector.shape_cast %47 : vector<8xf32> to vector<8x1xf32>
    %49 = tpu.reciprocal %48 {approx = true} : vector<8x1xf32> -> vector<8x1xf32>
    %50 = vector.broadcast %49 : vector<8x1xf32> to vector<8x8xf32>
    %51 = arith.mulf %46, %50 : vector<8x8xf32>
    %cst_22 = arith.constant dense<0.000000e+00> : vector<8x8xf32>
    %52 = tpu.matmul %51, %40, %cst_22 {dimension_numbers = #tpu.dot_dimension_numbers<[1], [0], [0], [1], [0, 0, 1, 1], [], []>} : vector<8x8xf32>, vector<8x8xf32>, vector<8x8xf32> -> vector<8x8xf32>
    %c0_23 = arith.constant 0 : index
    %c16 = arith.constant 16 : index
    %53 = vector.load %arg6[%c0_23, %c16] : memref<8x32xf32, #tpu.memory_space<vmem>>, vector<8x8xf32>
    tpu.vector_store %arg6[%c0_23, %c16], %52 {strides = array<i32>} : memref<8x32xf32, #tpu.memory_space<vmem>>, vector<8x8xf32>,
    %54 = vector.extract_strided_slice %5 {offsets = [0, 24], sizes = [8, 8], strides = [1, 1]} : vector<8x96xf32> to vector<8x8xf32>
    %55 = vector.extract_strided_slice %5 {offsets = [0, 56], sizes = [8, 8], strides = [1, 1]} : vector<8x96xf32> to vector<8x8xf32>
    %56 = vector.extract_strided_slice %5 {offsets = [0, 88], sizes = [8, 8], strides = [1, 1]} : vector<8x96xf32> to vector<8x8xf32>
    %cst_24 = arith.constant dense<0.000000e+00> : vector<8x8xf32>
    %57 = tpu.matmul %54, %55, %cst_24 {dimension_numbers = #tpu.dot_dimension_numbers<[1], [1], [0], [0], [0, 0, 1, 0], [], []>} : vector<8x8xf32>, vector<8x8xf32>, vector<8x8xf32> -> vector<8x8xf32>
    %cst_25 = arith.constant dense<0xFF800000> : vector<8xf32>
    %58 = vector.multi_reduction <maximumf>, %57, %cst_25 [1] : vector<8x8xf32> to vector<8xf32>
    %59 = vector.shape_cast %58 : vector<8xf32> to vector<8x1xf32>
    %60 = vector.broadcast %59 : vector<8x1xf32> to vector<8x8xf32>
    %61 = arith.subf %57, %60 : vector<8x8xf32>
    %62 = math.exp %61 : vector<8x8xf32>
    %cst_26 = arith.constant dense<0.000000e+00> : vector<8xf32>
    %63 = vector.multi_reduction <add>, %62, %cst_26 [1] : vector<8x8xf32> to vector<8xf32>
    %64 = vector.shape_cast %63 : vector<8xf32> to vector<8x1xf32>
    %65 = tpu.reciprocal %64 {approx = true} : vector<8x1xf32> -> vector<8x1xf32>
    %66 = vector.broadcast %65 : vector<8x1xf32> to vector<8x8xf32>
    %67 = arith.mulf %62, %66 : vector<8x8xf32>
    %cst_27 = arith.constant dense<0.000000e+00> : vector<8x8xf32>
    %68 = tpu.matmul %67, %56, %cst_27 {dimension_numbers = #tpu.dot_dimension_numbers<[1], [0], [0], [1], [0, 0, 1, 1], [], []>} : vector<8x8xf32>, vector<8x8xf32>, vector<8x8xf32> -> vector<8x8xf32>
    %c0_28 = arith.constant 0 : index
    %c24 = arith.constant 24 : index
    %69 = vector.load %arg6[%c0_28, %c24] : memref<8x32xf32, #tpu.memory_space<vmem>>, vector<8x8xf32>
    tpu.vector_store %arg6[%c0_28, %c24], %68 {strides = array<i32>} : memref<8x32xf32, #tpu.memory_space<vmem>>, vector<8x8xf32>,
    %c0_29 = arith.constant 0 : index
    %c0_30 = arith.constant 0 : index
    %70 = vector.load %arg6[%c0_29, %c0_30] : memref<8x32xf32, #tpu.memory_space<vmem>>, vector<8x32xf32>
    %cst_31 = arith.constant dense<0.000000e+00> : vector<8x32xf32>
    %71 = tpu.matmul %70, %3, %cst_31 {dimension_numbers = #tpu.dot_dimension_numbers<[1], [0], [0], [1], [0, 0, 1, 1], [], []>} : vector<8x32xf32>, vector<32x32xf32>, vector<8x32xf32> -> vector<8x32xf32>
    %72 = vector.broadcast %4 : vector<1x32xf32> to vector<8x32xf32>
    %73 = arith.addf %71, %72 : vector<8x32xf32>
    %c0_32 = arith.constant 0 : index
    %c0_33 = arith.constant 0 : index
    %c0_34 = arith.constant 0 : index
    %74 = vector.load %arg5[%c0_32, %c0_33, %c0_34] : memref<1x8x32xf32, #tpu.memory_space<vmem>>, vector<1x8x32xf32>
    %75 = vector.shape_cast %74 : vector<1x8x32xf32> to vector<8x32xf32>
    %76 = vector.shape_cast %73 : vector<8x32xf32> to vector<1x8x32xf32>
    tpu.vector_store %arg5[%c0_32, %c0_33, %c0_34], %76 {strides = array<i32>} : memref<1x8x32xf32, #tpu.memory_space<vmem>>, vector<1x8x32xf32>,
    return
  }
  func.func @transform_0(%arg0: i32) -> (i32, i32, i32) {
    %c0_i32 = arith.constant 0 : i32
    %c0_i32_0 = arith.constant 0 : i32
    %c0_i32_1 = arith.constant 0 : i32
    return %arg0, %c0_i32, %c0_i32_0 : i32, i32, i32
  }
  func.func @transform_1(%arg0: i32) -> (i32, i32) {
    %c0_i32 = arith.constant 0 : i32
    %c0_i32_0 = arith.constant 0 : i32
    %c0_i32_1 = arith.constant 0 : i32
    return %c0_i32, %c0_i32_0 : i32, i32
  }
  func.func @transform_2(%arg0: i32) -> (i32, i32) {
    %c0_i32 = arith.constant 0 : i32
    %c0_i32_0 = arith.constant 0 : i32
    %c0_i32_1 = arith.constant 0 : i32
    return %c0_i32, %c0_i32_0 : i32, i32
  }
  func.func @transform_3(%arg0: i32) -> (i32, i32) {
    %c0_i32 = arith.constant 0 : i32
    %c0_i32_0 = arith.constant 0 : i32
    %c0_i32_1 = arith.constant 0 : i32
    return %c0_i32, %c0_i32_0 : i32, i32
  }
  func.func @transform_4(%arg0: i32) -> (i32, i32, i32) {
    %c0_i32 = arith.constant 0 : i32
    %c0_i32_0 = arith.constant 0 : i32
    %c0_i32_1 = arith.constant 0 : i32
    return %arg0, %c0_i32, %c0_i32_0 : i32, i32, i32
  }
}

</mosaic_0001>

<llo_original>
// kernel: tpu_custom_call.1
$region0: #{tpu_custom_call.1}
  #allocation0 [shape = 'u32[]', space=smem, size = 0x4, offset = 0x4, fixed_abs, tag = 'smem constant byte address 0x4 - core index']
  #allocation1 [shape = 'u32[144,128]{1,0:T(1,128)}', space=vmem, size = 0x12000, scoped, tag = 'internal scratch']
  #allocation2 [shape = 'f32[8,32]{1,0:T(8,128)}', space=vmem, size = 0x1000, scoped, tag = 'scratch operand']
  %s0 = inlined_call_operand.hbm [shape: f32[2,8,32], index: 0, kind: input, shape index: {}]
  %s1 = inlined_call_operand.hbm [shape: f32[32,96], index: 1, kind: input, shape index: {}]
  %s2 = inlined_call_operand.hbm [shape: f32[32,32], index: 2, kind: input, shape index: {}]
  %s3 = inlined_call_operand.vmem [shape: f32[1,32], index: 3, kind: input, shape index: {}]
  %s4 = inlined_call_operand.hbm [shape: f32[2,8,32], index: 4, kind: output, shape index: {}]
  %s5 = sld [smem:[#allocation0]]
  $region61: #{tpu_custom_call.1} parent=0
    _
  %s7 = ssub.s32 1, %s5
  %s8 = scalar_select 0, %s7, %s5
  $region1: #{tpu_custom_call.1} parent=0
    #allocation3 [shape = 'u8[8192]{0}', space=vmem, size = 0x2000, scoped, tag = 'input window, operand 0']
    #allocation4 [shape = 's32[2]{0}', space=sflag, size = 0x8, scoped, tag = 'scoped memory for tpu_custom_call.1']
    #allocation5 [shape = 's32[2]{0}', space=sflag, size = 0x8, scoped, tag = 'scoped memory for tpu_custom_call.1']
    #allocation6 [shape = 'u8[16384]{0}', space=vmem, size = 0x4000, scoped, tag = 'input window, operand 1, single buffered']
    #allocation7 [shape = 's32[1]{0}', space=sflag, size = 0x4, scoped, tag = 'scoped memory for tpu_custom_call.1']
    #allocation8 [shape = 'u8[16384]{0}', space=vmem, size = 0x4000, scoped, tag = 'input window, operand 2, single buffered']
    #allocation9 [shape = 'u8[8192]{0}', space=vmem, size = 0x2000, scoped, tag = 'output window, operand 0']
    %9 = vsyncpa [#allocation4], 0
    %s10 = scalar_lea.sflag [#allocation4], 1
    %11 = vsyncpa %s10, 0
    %12 = vsyncpa [#allocation7], 0
    %13 = vsyncpa [#allocation5], 0
    %s14 = scalar_lea.sflag [#allocation5], 1
    %15 = vsyncpa %s14, 0
    loop: start=0, step=1, limit=4
    $region2: #{tpu_custom_call.1} parent=1 // loop_pre_header
      _
    $region3: #{tpu_custom_call.1} parent=1 // loop_header
      %s17 = sphi 0, %s21
      %p18 = scmp.ge.s32.totalorder %s17, 4
      %s27 = sphi 0, %s29
      %s30 = sphi 0, %s27
      %s31 = sphi 0, %s30
      %s47 = sphi 0, %s31
      %s51 = sphi 0, %s51
      %s53 = sphi 0, %s51
      %s54 = sphi 0, %s53
      %s68 = sphi 0, %s54
      %s72 = sphi 0, %s72
      %s74 = sphi 0, %s72
      %s75 = sphi 0, %s74
      %s89 = sphi 0, %s75
      %s93 = sphi 0, %s93
      %s95 = sphi 0, %s93
      %s96 = sphi 0, %s95
      %s110 = sphi 0, %s96
      %s116 = sphi 0, %s118
      %s119 = sphi 0, %s116
      %s120 = sphi 0, %s119
      %s136 = sphi 0, %s120
    $region4: #{tpu_custom_call.1} parent=1 // loop_header_branch
      %20 = sbr.rel (%p18) target = $region8
    $region5: #{tpu_custom_call.1} parent=1 // loop_body
      %s22 = ssub.s32 %s17, 1
      %s23 = ssub.s32 %s17, 2
      %s24 = sadd.s32 %s17, 1
      %s25 = ssub.s32 %s17, %s24
      %p26 = scmp.eq.s32.totalorder %s25, 0
      %s28 = sadd.s32 %s27, 1
      %s29 = scalar_select %p26, %s27, %s28
      %p32 = pneg %p26
      %p33 = scmp.eq.s32.totalorder %s17, 1
      %p34 = por %p32, %p33
      %p35 = scmp.ne.s32.totalorder %s27, %s30
      %p36 = scmp.eq.s32.totalorder %s17, 0
      %p37 = por %p35, %p36
      %p38 = scmp.ne.s32.totalorder %s27, %s30
      %p39 = scmp.eq.s32.totalorder %s22, 1
      %p40 = por %p38, %p39
      %p41 = scmp.ne.s32.totalorder %s30, %s31
      %p42 = scmp.eq.s32.totalorder %s22, 0
      %p43 = por %p41, %p42
      %p44 = scmp.ne.s32.totalorder %s30, %s31
      %p45 = scmp.eq.s32.totalorder %s23, 1
      %p46 = por %p44, %p45
      %p48 = scmp.ne.s32.totalorder %s31, %s47
      %p49 = scmp.eq.s32.totalorder %s23, 0
      %p50 = por %p48, %p49
      %s52 = sadd.s32 %s51, 1
      %p55 = scmp.eq.s32.totalorder %s17, 1
      %p56 = scmp.ne.s32.totalorder %s51, %s53
      %p57 = scmp.eq.s32.totalorder %s17, 0
      %p58 = por %p56, %p57
      %p59 = scmp.ne.s32.totalorder %s51, %s53
      %p60 = scmp.eq.s32.totalorder %s22, 1
      %p61 = por %p59, %p60
      %p62 = scmp.ne.s32.totalorder %s53, %s54
      %p63 = scmp.eq.s32.totalorder %s22, 0
      %p64 = por %p62, %p63
      %p65 = scmp.ne.s32.totalorder %s53, %s54
      %p66 = scmp.eq.s32.totalorder %s23, 1
      %p67 = por %p65, %p66
      %p69 = scmp.ne.s32.totalorder %s54, %s68
      %p70 = scmp.eq.s32.totalorder %s23, 0
      %p71 = por %p69, %p70
      %s73 = sadd.s32 %s72, 1
      %p76 = scmp.eq.s32.totalorder %s17, 1
      %p77 = scmp.ne.s32.totalorder %s72, %s74
      %p78 = scmp.eq.s32.totalorder %s17, 0
      %p79 = por %p77, %p78
      %p80 = scmp.ne.s32.totalorder %s72, %s74
      %p81 = scmp.eq.s32.totalorder %s22, 1
      %p82 = por %p80, %p81
      %p83 = scmp.ne.s32.totalorder %s74, %s75
      %p84 = scmp.eq.s32.totalorder %s22, 0
      %p85 = por %p83, %p84
      %p86 = scmp.ne.s32.totalorder %s74, %s75
      %p87 = scmp.eq.s32.totalorder %s23, 1
      %p88 = por %p86, %p87
      %p90 = scmp.ne.s32.totalorder %s75, %s89
      %p91 = scmp.eq.s32.totalorder %s23, 0
      %p92 = por %p90, %p91
      %s94 = sadd.s32 %s93, 1
      %p97 = scmp.eq.s32.totalorder %s17, 1
      %p98 = scmp.ne.s32.totalorder %s93, %s95
      %p99 = scmp.eq.s32.totalorder %s17, 0
      %p100 = por %p98, %p99
      %p101 = scmp.ne.s32.totalorder %s93, %s95
      %p102 = scmp.eq.s32.totalorder %s22, 1
      %p103 = por %p101, %p102
      %p104 = scmp.ne.s32.totalorder %s95, %s96
      %p105 = scmp.eq.s32.totalorder %s22, 0
      %p106 = por %p104, %p105
      %p107 = scmp.ne.s32.totalorder %s95, %s96
      %p108 = scmp.eq.s32.totalorder %s23, 1
      %p109 = por %p107, %p108
      %p111 = scmp.ne.s32.totalorder %s96, %s110
      %p112 = scmp.eq.s32.totalorder %s23, 0
      %p113 = por %p111, %p112
      %s114 = ssub.s32 %s17, %s24
      %p115 = scmp.eq.s32.totalorder %s114, 0
      %s117 = sadd.s32 %s116, 1
      %s118 = scalar_select %p115, %s116, %s117
      %p121 = pneg %p115
      %p122 = scmp.eq.s32.totalorder %s17, 1
      %p123 = por %p121, %p122
      %p124 = scmp.ne.s32.totalorder %s116, %s119
      %p125 = scmp.eq.s32.totalorder %s17, 0
      %p126 = por %p124, %p125
      %p127 = scmp.ne.s32.totalorder %s116, %s119
      %p128 = scmp.eq.s32.totalorder %s22, 1
      %p129 = por %p127, %p128
      %p130 = scmp.ne.s32.totalorder %s119, %s120
      %p131 = scmp.eq.s32.totalorder %s22, 0
      %p132 = por %p130, %p131
      %p133 = scmp.ne.s32.totalorder %s119, %s120
      %p134 = scmp.eq.s32.totalorder %s23, 1
      %p135 = por %p133, %p134
      %p137 = scmp.ne.s32.totalorder %s120, %s136
      %p138 = scmp.eq.s32.totalorder %s23, 0
      %p139 = por %p137, %p138
      %p140 = scmp.le.s32.totalorder 1, %s17
      %p141 = scmp.lt.s32.totalorder %s17, 3
      %p142 = pnand %p140, %p141
      %p143 = pneg %p142
      // Predicated region
      $region9: #{tpu_custom_call.1} parent=5 // pred_check
        _
      $region10: #{tpu_custom_call.1} parent=5 // pred_check_branch
        %145 = sbr.rel (%p142) target = $region12
      $region11: #{tpu_custom_call.1} parent=5 // pred_region
        %s146 = ssub.s32 %s17, 1
        // Predicated region
        $region13: #{tpu_custom_call.1} parent=11 // pred_check
          %p147 = pneg %p64
        $region14: #{tpu_custom_call.1} parent=11 // pred_check_branch
          %149 = sbr.rel (%p147) target = $region16
        $region15: #{tpu_custom_call.1} parent=11 // pred_region
          %s151 = ssub.s32 512, 512
          %152 = vsyncadd [#allocation7], %s151
          %s153 = sshll.u32 [#allocation6], 4
          %s154 = int_to_ptr.vmem [resolvable:$true] %s153
          %159 = dma.hbm_to_vmem [thread:$0]  %s1, 512, %s154, [#allocation7], 128, 128, 8
        $region16: #{tpu_custom_call.1} parent=11 // pred_fallthru
          _
        // Predicated region
        $region17: #{tpu_custom_call.1} parent=11 // pred_check
          %p160 = pneg %p85
        $region18: #{tpu_custom_call.1} parent=11 // pred_check_branch
          %162 = sbr.rel (%p160) target = $region20
        $region19: #{tpu_custom_call.1} parent=11 // pred_region
          %s164 = ssub.s32 512, 512
          %165 = vsyncadd [#allocation7], %s164
          %s166 = sshll.u32 [#allocation8], 4
          %s167 = int_to_ptr.vmem [resolvable:$true] %s166
          %172 = dma.hbm_to_vmem [thread:$0]  %s2, 512, %s167, [#allocation7], 128, 128, 8
        $region20: #{tpu_custom_call.1} parent=11 // pred_fallthru
          _
        // Predicated region
        $region21: #{tpu_custom_call.1} parent=11 // pred_check
          %p173 = pneg %p106
        $region22: #{tpu_custom_call.1} parent=11 // pred_check_branch
          %175 = sbr.rel (%p173) target = $region24
        $region23: #{tpu_custom_call.1} parent=11 // pred_region
          _
        $region24: #{tpu_custom_call.1} parent=11 // pred_fallthru
          _
      $region12: #{tpu_custom_call.1} parent=5 // pred_fallthru
        _
      %p176 = scmp.lt.s32.totalorder %s17, 2
      // Predicated region
      $region25: #{tpu_custom_call.1} parent=5 // pred_check
        %p177 = pneg %p176
      $region26: #{tpu_custom_call.1} parent=5 // pred_check_branch
        %179 = sbr.rel (%p177) target = $region28
      $region27: #{tpu_custom_call.1} parent=5 // pred_region
        // Predicated region
        $region29: #{tpu_custom_call.1} parent=27 // pred_check
          %p180 = pneg %p37
        $region30: #{tpu_custom_call.1} parent=27 // pred_check_branch
          %182 = sbr.rel (%p180) target = $region32
        $region31: #{tpu_custom_call.1} parent=27 // pred_region
          %s183 = sand.u32 %s27, 1
          %s184 = scalar_lea.sflag [#allocation4], %s183
          %s185 = sand.u32 %s27, 1
          %s186 = smul.addr %s185, 8
          %s187 = scalar_lea.vmem [#allocation3], %s186
          %s189 = ssub.s32 128, 128
          %190 = vsyncadd %s184, %s189
          %s191 = smul.addr %s17, 128
          %s192 = scalar_lea.hbm %s0, %s191
          %s194 = sshll.u32 %s187, 4
          %s195 = int_to_ptr.vmem [resolvable:$true] %s194
          %197 = dma.hbm_to_vmem [thread:$0]  %s192, 128, %s195, %s184
        $region32: #{tpu_custom_call.1} parent=27 // pred_fallthru
          _
      $region28: #{tpu_custom_call.1} parent=5 // pred_fallthru
        _
      %p198 = scmp.le.s32.totalorder 1, %s17
      %p199 = scmp.lt.s32.totalorder %s17, 3
      %p200 = pnand %p198, %p199
      %p201 = pneg %p200
      // Predicated region
      $region33: #{tpu_custom_call.1} parent=5 // pred_check
        _
      $region34: #{tpu_custom_call.1} parent=5 // pred_check_branch
        %203 = sbr.rel (%p200) target = $region36
      $region35: #{tpu_custom_call.1} parent=5 // pred_region
        %s204 = ssub.s32 %s17, 1
        %s205 = sand.u32 %s30, 1
        %s206 = scalar_lea.sflag [#allocation4], %s205
        %s207 = sand.u32 %s30, 1
        %s208 = smul.addr %s207, 8
        %s209 = scalar_lea.vmem [#allocation3], %s208
        // Predicated region
        $region37: #{tpu_custom_call.1} parent=35 // pred_check
          %p210 = pneg %p43
        $region38: #{tpu_custom_call.1} parent=35 // pred_check_branch
          %212 = sbr.rel (%p210) target = $region40
        $region39: #{tpu_custom_call.1} parent=35 // pred_region
          %213 = dma.done %s206, 128
        $region40: #{tpu_custom_call.1} parent=35 // pred_fallthru
          _
        // Predicated region
        $region41: #{tpu_custom_call.1} parent=35 // pred_check
          %p214 = pneg %p64
        $region42: #{tpu_custom_call.1} parent=35 // pred_check_branch
          %216 = sbr.rel (%p214) target = $region44
        $region43: #{tpu_custom_call.1} parent=35 // pred_region
          %217 = dma.done [#allocation7], 512
        $region44: #{tpu_custom_call.1} parent=35 // pred_fallthru
          _
        // Predicated region
        $region45: #{tpu_custom_call.1} parent=35 // pred_check
          %p218 = pneg %p85
        $region46: #{tpu_custom_call.1} parent=35 // pred_check_branch
          %220 = sbr.rel (%p218) target = $region48
        $region47: #{tpu_custom_call.1} parent=35 // pred_region
          %221 = dma.done [#allocation7], 512
        $region48: #{tpu_custom_call.1} parent=35 // pred_fallthru
          _
        %s222 = sand.u32 %s30, 1
        %s223 = scalar_lea.sflag [#allocation4], %s222
        %s224 = sand.u32 %s30, 1
        %s225 = smul.addr %s224, 8
        %s226 = scalar_lea.vmem [#allocation3], %s225
        %p227 = pneg %p43
        %p228 = pneg %p40
        %p229 = pneg %p64
        %p230 = pneg %p61
        %p231 = pneg %p85
        %p232 = pneg %p82
        %p233 = pneg %p106
        %p234 = pneg %p103
        %p235 = pneg %p132
        %p236 = pneg %p129
        %s237 = sand.u32 %s119, 1
        %s238 = scalar_lea.sflag [#allocation5], %s237
        %s239 = sand.u32 %s119, 1
        %s240 = smul.addr %s239, 8
        %s241 = scalar_lea.vmem [#allocation9], %s240
        %v242 = vld [vmem:[%s209] sm:$0xff]
        %v243 = vld [vmem:[#allocation6] sm:$0xff]
        %v244 = vld [vmem:[#allocation6 + $0x8] sm:$0xff]
        %v245 = vld [vmem:[#allocation6 + $0x10] sm:$0xff]
        %v246 = vld [vmem:[#allocation6 + $0x18] sm:$0xff]
        %v247 = vld [vmem:[#allocation8] sm:$0xff]
        %v248 = vld [vmem:[#allocation8 + $0x8] sm:$0xff]
        %v249 = vld [vmem:[#allocation8 + $0x10] sm:$0xff]
        %v250 = vld [vmem:[#allocation8 + $0x18] sm:$0xff]
        %v251 = vld [vmem:[%s3] sm:$0x1]
        %vm252 = vcmask 261120
        %v254 = vsel %vm252, %v242, 0
        %256 = vmatprep.subr.mxu0 0.0
        %257 = vmatpush1.msra.mxu0 %v243
        %258 = vmatprep.subr.mxu0 0.0
        %259 = vmatpush1.msra.mxu0 %v244
        %260 = vmatprep.subr.mxu0 0.0
        %261 = vmatpush1.msra.mxu0 %v245
        %262 = vmatprep.subr.mxu0 0.0
        %263 = vmatpush1.msra.mxu0 %v246
        %264 = vmatprep.subr.mxu0 0.0
        %265 = vmatpush1.msra.mxu0 0.0
        %266 = vmatprep.subr.mxu0 0.0
        %267 = vmatpush1.msra.mxu0 0.0
        %268 = vmatprep.subr.mxu0 0.0
        %269 = vmatpush1.msra.mxu0 0.0
        %270 = vmatprep.subr.mxu0 0.0
        %271 = vmatpush1.msra.mxu0 0.0
        %272 = vmatprep.subr.mxu0 0.0
        %273 = vmatpush1.msra.mxu0 0.0
        %274 = vmatprep.subr.mxu0 0.0
        %275 = vmatpush1.msra.mxu0 0.0
        %276 = vmatprep.subr.mxu0 0.0
        %277 = vmatpush1.msra.mxu0 0.0
        %278 = vmatprep.subr.mxu0 0.0
        %279 = vmatpush1.msra.mxu0 0.0
        %280 = vmatprep.subr.mxu0 0.0
        %281 = vmatpush1.msra.mxu0 0.0
        %282 = vmatprep.subr.mxu0 0.0
        %283 = vmatpush1.msra.mxu0 0.0
        %284 = vmatprep.subr.mxu0 0.0
        %285 = vmatpush1.msra.mxu0 0.0
        %286 = vmatprep.subr.mxu0 0.0
        %287 = vmatpush1.msra.mxu0 0.0
        %288 = vmatprep.subr.mxu0 0.0
        %289 = vmatpush1.msra.mxu0 0.0
        %290 = vmatprep.subr.mxu0 0.0
        %291 = vmatpush1.msra.mxu0 0.0
        %292 = vmatprep.subr.mxu0 0.0
        %293 = vmatpush1.msra.mxu0 0.0
        %294 = vmatprep.subr.mxu0 0.0
        %295 = vmatpush1.msra.mxu0 0.0
        %296 = vmatprep.subr.mxu0 0.0
        %297 = vmatpush1.msra.mxu0 0.0
        %298 = vmatprep.subr.mxu0 0.0
        %299 = vmatpush1.msra.mxu0 0.0
        %300 = vmatprep.subr.mxu0 0.0
        %301 = vmatpush1.msra.mxu0 0.0
        %302 = vmatprep.subr.mxu0 0.0
        %303 = vmatpush1.msra.mxu0 0.0
        %304 = vmatprep.subr.mxu0 0.0
        %305 = vmatpush1.msra.mxu0 0.0
        %306 = vmatprep.subr.mxu0 0.0
        %307 = vmatpush1.msra.mxu0 0.0
        %308 = vmatprep.subr.mxu0 0.0
        %309 = vmatpush1.msra.mxu0 0.0
        %310 = vmatprep.subr.mxu0 0.0
        %311 = vmatpush1.msra.mxu0 0.0
        %312 = vmatprep.subr.mxu0 0.0
        %313 = vmatpush1.msra.mxu0 0.0
        %314 = vmatprep.subr.mxu0 0.0
        %315 = vmatpush1.msra.mxu0 0.0
        %316 = vmatprep.subr.mxu0 0.0
        %317 = vmatpush1.msra.mxu0 0.0
        %318 = vmatprep.subr.mxu0 0.0
        %319 = vmatpush1.msra.mxu0 0.0
        %320 = vmatprep.mubr.f32.mxu0 0.0
        %321 = vmatmul.mubr.f32.gmra.mrb[0].mxu0 %v254
        %v322 = vpop.f32.mrb[0].mxu0
        %v323 = vadd.f32 0.0, %v322
        %v324 = vpop.f32.mrb[0].mxu0
        %325 = vdwg.mxu0
        %327 = vrot.lane.b32.xlu0 %v323, 96
        %v328 = vpop.permute.xlu0 %327
        %vm329 = vcmask 64512
        %v330 = vsel %vm329, %v323, 0
        %v332 = vsel %vm329, %v328, 0
        %334 = vmatprep.subr.mxu0 0.0
        %335 = vmatpush1.xpose.msra.mxu0 %v332
        %336 = vmatprep.subr.mxu0 0.0
        %337 = vmatpush1.xpose.msra.mxu0 0.0
        %338 = vmatprep.subr.mxu0 0.0
        %339 = vmatpush1.xpose.msra.mxu0 0.0
        %340 = vmatprep.subr.mxu0 0.0
        %341 = vmatpush1.xpose.msra.mxu0 0.0
        %342 = vmatprep.subr.mxu0 0.0
        %343 = vmatpush1.xpose.msra.mxu0 0.0
        %344 = vmatprep.subr.mxu0 0.0
        %345 = vmatpush1.xpose.msra.mxu0 0.0
        %346 = vmatprep.subr.mxu0 0.0
        %347 = vmatpush1.xpose.msra.mxu0 0.0
        %348 = vmatprep.subr.mxu0 0.0
        %349 = vmatpush1.xpose.msra.mxu0 0.0
        %350 = vmatprep.subr.mxu0 0.0
        %351 = vmatpush1.xpose.msra.mxu0 0.0
        %352 = vmatprep.subr.mxu0 0.0
        %353 = vmatpush1.xpose.msra.mxu0 0.0
        %354 = vmatprep.subr.mxu0 0.0
        %355 = vmatpush1.xpose.msra.mxu0 0.0
        %356 = vmatprep.subr.mxu0 0.0
        %357 = vmatpush1.xpose.msra.mxu0 0.0
        %358 = vmatprep.subr.mxu0 0.0
        %359 = vmatpush1.xpose.msra.mxu0 0.0
        %360 = vmatprep.subr.mxu0 0.0
        %361 = vmatpush1.xpose.msra.mxu0 0.0
        %362 = vmatprep.subr.mxu0 0.0
        %363 = vmatpush1.xpose.msra.mxu0 0.0
        %364 = vmatprep.subr.mxu0 0.0
        %365 = vmatpush1.xpose.msra.mxu0 0.0
        %366 = vmatprep.subr.mxu0 0.0
        %367 = vmatpush1.xpose.msra.mxu0 0.0
        %368 = vmatprep.subr.mxu0 0.0
        %369 = vmatpush1.xpose.msra.mxu0 0.0
        %370 = vmatprep.subr.mxu0 0.0
        %371 = vmatpush1.xpose.msra.mxu0 0.0
        %372 = vmatprep.subr.mxu0 0.0
        %373 = vmatpush1.xpose.msra.mxu0 0.0
        %374 = vmatprep.subr.mxu0 0.0
        %375 = vmatpush1.xpose.msra.mxu0 0.0
        %376 = vmatprep.subr.mxu0 0.0
        %377 = vmatpush1.xpose.msra.mxu0 0.0
        %378 = vmatprep.subr.mxu0 0.0
        %379 = vmatpush1.xpose.msra.mxu0 0.0
        %380 = vmatprep.subr.mxu0 0.0
        %381 = vmatpush1.xpose.msra.mxu0 0.0
        %382 = vmatprep.subr.mxu0 0.0
        %383 = vmatpush1.xpose.msra.mxu0 0.0
        %384 = vmatprep.subr.mxu0 0.0
        %385 = vmatpush1.xpose.msra.mxu0 0.0
        %386 = vmatprep.subr.mxu0 0.0
        %387 = vmatpush1.xpose.msra.mxu0 0.0
        %388 = vmatprep.subr.mxu0 0.0
        %389 = vmatpush1.xpose.msra.mxu0 0.0
        %390 = vmatprep.subr.mxu0 0.0
        %391 = vmatpush1.xpose.msra.mxu0 0.0
        %392 = vmatprep.subr.mxu0 0.0
        %393 = vmatpush1.xpose.msra.mxu0 0.0
        %394 = vmatprep.subr.mxu0 0.0
        %395 = vmatpush1.xpose.msra.mxu0 0.0
        %396 = vmatprep.subr.mxu0 0.0
        %397 = vmatpush1.xpose.msra.mxu0 0.0
        %398 = vmatprep.mubr.f32.mxu0 0.0
        %399 = vmatmul.mubr.f32.gmra.mrb[0].mxu0 %v330
        %v400 = vpop.f32.mrb[0].mxu0
        %v401 = vadd.f32 0.0, %v400
        %v402 = vpop.f32.mrb[0].mxu0
        %403 = vdwg.mxu0
        %v404 = vsel %vm329, %v401, -inf
        %405 = vmax.xlane.f32.xlu0 %v404
        %v406 = vpop.xlane.xlu0 %405
        %v407 = vsub.f32 %v401, %v406
        %v408 = vmul.f32 %v407, 1.442695
        %v409 = vpow.pop %v408
        %v410 = vsel %vm329, %v409, 0.0
        %411 = vadd.xlane.f32.xlu0 %v410
        %v412 = vpop.xlane.xlu0 %411
        %v413 = vrcp.pop %v412
        %v414 = vmul.f32 %v409, %v413
        %415 = vrot.lane.b32.xlu0 %v323, 64
        %v416 = vpop.permute.xlu0 %415
        %v419 = vsel %vm329, %v414, 0
        %421 = vmatprep.subr.mxu0 0.0
        %422 = vmatpush1.msra.mxu0 %v416
        %423 = vmatprep.subr.mxu0 0.0
        %424 = vmatpush1.msra.mxu0 0.0
        %425 = vmatprep.subr.mxu0 0.0
        %426 = vmatpush1.msra.mxu0 0.0
        %427 = vmatprep.subr.mxu0 0.0
        %428 = vmatpush1.msra.mxu0 0.0
        %429 = vmatprep.subr.mxu0 0.0
        %430 = vmatpush1.msra.mxu0 0.0
        %431 = vmatprep.subr.mxu0 0.0
        %432 = vmatpush1.msra.mxu0 0.0
        %433 = vmatprep.subr.mxu0 0.0
        %434 = vmatpush1.msra.mxu0 0.0
        %435 = vmatprep.subr.mxu0 0.0
        %436 = vmatpush1.msra.mxu0 0.0
        %437 = vmatprep.subr.mxu0 0.0
        %438 = vmatpush1.msra.mxu0 0.0
        %439 = vmatprep.subr.mxu0 0.0
        %440 = vmatpush1.msra.mxu0 0.0
        %441 = vmatprep.subr.mxu0 0.0
        %442 = vmatpush1.msra.mxu0 0.0
        %443 = vmatprep.subr.mxu0 0.0
        %444 = vmatpush1.msra.mxu0 0.0
        %445 = vmatprep.subr.mxu0 0.0
        %446 = vmatpush1.msra.mxu0 0.0
        %447 = vmatprep.subr.mxu0 0.0
        %448 = vmatpush1.msra.mxu0 0.0
        %449 = vmatprep.subr.mxu0 0.0
        %450 = vmatpush1.msra.mxu0 0.0
        %451 = vmatprep.subr.mxu0 0.0
        %452 = vmatpush1.msra.mxu0 0.0
        %453 = vmatprep.subr.mxu0 0.0
        %454 = vmatpush1.msra.mxu0 0.0
        %455 = vmatprep.subr.mxu0 0.0
        %456 = vmatpush1.msra.mxu0 0.0
        %457 = vmatprep.subr.mxu0 0.0
        %458 = vmatpush1.msra.mxu0 0.0
        %459 = vmatprep.subr.mxu0 0.0
        %460 = vmatpush1.msra.mxu0 0.0
        %461 = vmatprep.subr.mxu0 0.0
        %462 = vmatpush1.msra.mxu0 0.0
        %463 = vmatprep.subr.mxu0 0.0
        %464 = vmatpush1.msra.mxu0 0.0
        %465 = vmatprep.subr.mxu0 0.0
        %466 = vmatpush1.msra.mxu0 0.0
        %467 = vmatprep.subr.mxu0 0.0
        %468 = vmatpush1.msra.mxu0 0.0
        %469 = vmatprep.subr.mxu0 0.0
        %470 = vmatpush1.msra.mxu0 0.0
        %471 = vmatprep.subr.mxu0 0.0
        %472 = vmatpush1.msra.mxu0 0.0
        %473 = vmatprep.subr.mxu0 0.0
        %474 = vmatpush1.msra.mxu0 0.0
        %475 = vmatprep.subr.mxu0 0.0
        %476 = vmatpush1.msra.mxu0 0.0
        %477 = vmatprep.subr.mxu0 0.0
        %478 = vmatpush1.msra.mxu0 0.0
        %479 = vmatprep.subr.mxu0 0.0
        %480 = vmatpush1.msra.mxu0 0.0
        %481 = vmatprep.subr.mxu0 0.0
        %482 = vmatpush1.msra.mxu0 0.0
        %483 = vmatprep.subr.mxu0 0.0
        %484 = vmatpush1.msra.mxu0 0.0
        %485 = vmatprep.mubr.f32.mxu0 0.0
        %486 = vmatmul.mubr.f32.gmra.mrb[0].mxu0 %v419
        %v487 = vpop.f32.mrb[0].mxu0
        %v488 = vadd.f32 0.0, %v487
        %v489 = vpop.f32.mrb[0].mxu0
        %490 = vdwg.mxu0
        %491 = vst.msk [vmem:[#allocation2] sm:$0xff] %vm329, %v488
        %492 = vrot.lane.b32.xlu0 %v323, 120
        %v493 = vpop.permute.xlu0 %492
        %494 = vrot.lane.b32.xlu0 %v323, 88
        %v495 = vpop.permute.xlu0 %494
        %v496 = vsel %vm329, %v493, 0
        %v498 = vsel %vm329, %v495, 0
        %500 = vmatprep.subr.mxu0 0.0
        %501 = vmatpush1.xpose.msra.mxu0 %v498
        %502 = vmatprep.subr.mxu0 0.0
        %503 = vmatpush1.xpose.msra.mxu0 0.0
        %504 = vmatprep.subr.mxu0 0.0
        %505 = vmatpush1.xpose.msra.mxu0 0.0
        %506 = vmatprep.subr.mxu0 0.0
        %507 = vmatpush1.xpose.msra.mxu0 0.0
        %508 = vmatprep.subr.mxu0 0.0
        %509 = vmatpush1.xpose.msra.mxu0 0.0
        %510 = vmatprep.subr.mxu0 0.0
        %511 = vmatpush1.xpose.msra.mxu0 0.0
        %512 = vmatprep.subr.mxu0 0.0
        %513 = vmatpush1.xpose.msra.mxu0 0.0
        %514 = vmatprep.subr.mxu0 0.0
        %515 = vmatpush1.xpose.msra.mxu0 0.0
        %516 = vmatprep.subr.mxu0 0.0
        %517 = vmatpush1.xpose.msra.mxu0 0.0
        %518 = vmatprep.subr.mxu0 0.0
        %519 = vmatpush1.xpose.msra.mxu0 0.0
        %520 = vmatprep.subr.mxu0 0.0
        %521 = vmatpush1.xpose.msra.mxu0 0.0
        %522 = vmatprep.subr.mxu0 0.0
        %523 = vmatpush1.xpose.msra.mxu0 0.0
        %524 = vmatprep.subr.mxu0 0.0
        %525 = vmatpush1.xpose.msra.mxu0 0.0
        %526 = vmatprep.subr.mxu0 0.0
        %527 = vmatpush1.xpose.msra.mxu0 0.0
        %528 = vmatprep.subr.mxu0 0.0
        %529 = vmatpush1.xpose.msra.mxu0 0.0
        %530 = vmatprep.subr.mxu0 0.0
        %531 = vmatpush1.xpose.msra.mxu0 0.0
        %532 = vmatprep.subr.mxu0 0.0
        %533 = vmatpush1.xpose.msra.mxu0 0.0
        %534 = vmatprep.subr.mxu0 0.0
        %535 = vmatpush1.xpose.msra.mxu0 0.0
        %536 = vmatprep.subr.mxu0 0.0
        %537 = vmatpush1.xpose.msra.mxu0 0.0
        %538 = vmatprep.subr.mxu0 0.0
        %539 = vmatpush1.xpose.msra.mxu0 0.0
        %540 = vmatprep.subr.mxu0 0.0
        %541 = vmatpush1.xpose.msra.mxu0 0.0
        %542 = vmatprep.subr.mxu0 0.0
        %543 = vmatpush1.xpose.msra.mxu0 0.0
        %544 = vmatprep.subr.mxu0 0.0
        %545 = vmatpush1.xpose.msra.mxu0 0.0
        %546 = vmatprep.subr.mxu0 0.0
        %547 = vmatpush1.xpose.msra.mxu0 0.0
        %548 = vmatprep.subr.mxu0 0.0
        %549 = vmatpush1.xpose.msra.mxu0 0.0
        %550 = vmatprep.subr.mxu0 0.0
        %551 = vmatpush1.xpose.msra.mxu0 0.0
        %552 = vmatprep.subr.mxu0 0.0
        %553 = vmatpush1.xpose.msra.mxu0 0.0
        %554 = vmatprep.subr.mxu0 0.0
        %555 = vmatpush1.xpose.msra.mxu0 0.0
        %556 = vmatprep.subr.mxu0 0.0
        %557 = vmatpush1.xpose.msra.mxu0 0.0
        %558 = vmatprep.subr.mxu0 0.0
        %559 = vmatpush1.xpose.msra.mxu0 0.0
        %560 = vmatprep.subr.mxu0 0.0
        %561 = vmatpush1.xpose.msra.mxu0 0.0
        %562 = vmatprep.subr.mxu0 0.0
        %563 = vmatpush1.xpose.msra.mxu0 0.0
        %564 = vmatprep.mubr.f32.mxu0 0.0
        %565 = vmatmul.mubr.f32.gmra.mrb[0].mxu0 %v496
        %v566 = vpop.f32.mrb[0].mxu0
        %v567 = vadd.f32 0.0, %v566
        %v568 = vpop.f32.mrb[0].mxu0
        %569 = vdwg.mxu0
        %v570 = vsel %vm329, %v567, -inf
        %571 = vmax.xlane.f32.xlu0 %v570
        %v572 = vpop.xlane.xlu0 %571
        %v573 = vsub.f32 %v567, %v572
        %v574 = vmul.f32 %v573, 1.442695
        %v575 = vpow.pop %v574
        %v576 = vsel %vm329, %v575, 0.0
        %577 = vadd.xlane.f32.xlu0 %v576
        %v578 = vpop.xlane.xlu0 %577
        %v579 = vrcp.pop %v578
        %v580 = vmul.f32 %v575, %v579
        %581 = vrot.lane.b32.xlu0 %v323, 56
        %v582 = vpop.permute.xlu0 %581
        %v585 = vsel %vm329, %v580, 0
        %587 = vmatprep.subr.mxu0 0.0
        %588 = vmatpush1.msra.mxu0 %v582
        %589 = vmatprep.subr.mxu0 0.0
        %590 = vmatpush1.msra.mxu0 0.0
        %591 = vmatprep.subr.mxu0 0.0
        %592 = vmatpush1.msra.mxu0 0.0
        %593 = vmatprep.subr.mxu0 0.0
        %594 = vmatpush1.msra.mxu0 0.0
        %595 = vmatprep.subr.mxu0 0.0
        %596 = vmatpush1.msra.mxu0 0.0
        %597 = vmatprep.subr.mxu0 0.0
        %598 = vmatpush1.msra.mxu0 0.0
        %599 = vmatprep.subr.mxu0 0.0
        %600 = vmatpush1.msra.mxu0 0.0
        %601 = vmatprep.subr.mxu0 0.0
        %602 = vmatpush1.msra.mxu0 0.0
        %603 = vmatprep.subr.mxu0 0.0
        %604 = vmatpush1.msra.mxu0 0.0
        %605 = vmatprep.subr.mxu0 0.0
        %606 = vmatpush1.msra.mxu0 0.0
        %607 = vmatprep.subr.mxu0 0.0
        %608 = vmatpush1.msra.mxu0 0.0
        %609 = vmatprep.subr.mxu0 0.0
        %610 = vmatpush1.msra.mxu0 0.0
        %611 = vmatprep.subr.mxu0 0.0
        %612 = vmatpush1.msra.mxu0 0.0
        %613 = vmatprep.subr.mxu0 0.0
        %614 = vmatpush1.msra.mxu0 0.0
        %615 = vmatprep.subr.mxu0 0.0
        %616 = vmatpush1.msra.mxu0 0.0
        %617 = vmatprep.subr.mxu0 0.0
        %618 = vmatpush1.msra.mxu0 0.0
        %619 = vmatprep.subr.mxu0 0.0
        %620 = vmatpush1.msra.mxu0 0.0
        %621 = vmatprep.subr.mxu0 0.0
        %622 = vmatpush1.msra.mxu0 0.0
        %623 = vmatprep.subr.mxu0 0.0
        %624 = vmatpush1.msra.mxu0 0.0
        %625 = vmatprep.subr.mxu0 0.0
        %626 = vmatpush1.msra.mxu0 0.0
        %627 = vmatprep.subr.mxu0 0.0
        %628 = vmatpush1.msra.mxu0 0.0
        %629 = vmatprep.subr.mxu0 0.0
        %630 = vmatpush1.msra.mxu0 0.0
        %631 = vmatprep.subr.mxu0 0.0
        %632 = vmatpush1.msra.mxu0 0.0
        %633 = vmatprep.subr.mxu0 0.0
        %634 = vmatpush1.msra.mxu0 0.0
        %635 = vmatprep.subr.mxu0 0.0
        %636 = vmatpush1.msra.mxu0 0.0
        %637 = vmatprep.subr.mxu0 0.0
        %638 = vmatpush1.msra.mxu0 0.0
        %639 = vmatprep.subr.mxu0 0.0
        %640 = vmatpush1.msra.mxu0 0.0
        %641 = vmatprep.subr.mxu0 0.0
        %642 = vmatpush1.msra.mxu0 0.0
        %643 = vmatprep.subr.mxu0 0.0
        %644 = vmatpush1.msra.mxu0 0.0
        %645 = vmatprep.subr.mxu0 0.0
        %646 = vmatpush1.msra.mxu0 0.0
        %647 = vmatprep.subr.mxu0 0.0
        %648 = vmatpush1.msra.mxu0 0.0
        %649 = vmatprep.subr.mxu0 0.0
        %650 = vmatpush1.msra.mxu0 0.0
        %651 = vmatprep.mubr.f32.mxu0 0.0
        %652 = vmatmul.mubr.f32.gmra.mrb[0].mxu0 %v585
        %v653 = vpop.f32.mrb[0].mxu0
        %v654 = vadd.f32 0.0, %v653
        %v655 = vpop.f32.mrb[0].mxu0
        %656 = vdwg.mxu0
        %658 = vrot.lane.b32.xlu0 %v654, 8
        %v659 = vpop.permute.xlu0 %658
        %vm661 = vcmask 130112
        %662 = vst.msk [vmem:[#allocation2] sm:$0xff] %vm661, %v659
        %663 = vrot.lane.b32.xlu0 %v323, 112
        %v664 = vpop.permute.xlu0 %663
        %665 = vrot.lane.b32.xlu0 %v323, 80
        %v666 = vpop.permute.xlu0 %665
        %v667 = vsel %vm329, %v664, 0
        %v669 = vsel %vm329, %v666, 0
        %671 = vmatprep.subr.mxu0 0.0
        %672 = vmatpush1.xpose.msra.mxu0 %v669
        %673 = vmatprep.subr.mxu0 0.0
        %674 = vmatpush1.xpose.msra.mxu0 0.0
        %675 = vmatprep.subr.mxu0 0.0
        %676 = vmatpush1.xpose.msra.mxu0 0.0
        %677 = vmatprep.subr.mxu0 0.0
        %678 = vmatpush1.xpose.msra.mxu0 0.0
        %679 = vmatprep.subr.mxu0 0.0
        %680 = vmatpush1.xpose.msra.mxu0 0.0
        %681 = vmatprep.subr.mxu0 0.0
        %682 = vmatpush1.xpose.msra.mxu0 0.0
        %683 = vmatprep.subr.mxu0 0.0
        %684 = vmatpush1.xpose.msra.mxu0 0.0
        %685 = vmatprep.subr.mxu0 0.0
        %686 = vmatpush1.xpose.msra.mxu0 0.0
        %687 = vmatprep.subr.mxu0 0.0
        %688 = vmatpush1.xpose.msra.mxu0 0.0
        %689 = vmatprep.subr.mxu0 0.0
        %690 = vmatpush1.xpose.msra.mxu0 0.0
        %691 = vmatprep.subr.mxu0 0.0
        %692 = vmatpush1.xpose.msra.mxu0 0.0
        %693 = vmatprep.subr.mxu0 0.0
        %694 = vmatpush1.xpose.msra.mxu0 0.0
        %695 = vmatprep.subr.mxu0 0.0
        %696 = vmatpush1.xpose.msra.mxu0 0.0
        %697 = vmatprep.subr.mxu0 0.0
        %698 = vmatpush1.xpose.msra.mxu0 0.0
        %699 = vmatprep.subr.mxu0 0.0
        %700 = vmatpush1.xpose.msra.mxu0 0.0
        %701 = vmatprep.subr.mxu0 0.0
        %702 = vmatpush1.xpose.msra.mxu0 0.0
        %703 = vmatprep.subr.mxu0 0.0
        %704 = vmatpush1.xpose.msra.mxu0 0.0
        %705 = vmatprep.subr.mxu0 0.0
        %706 = vmatpush1.xpose.msra.mxu0 0.0
        %707 = vmatprep.subr.mxu0 0.0
        %708 = vmatpush1.xpose.msra.mxu0 0.0
        %709 = vmatprep.subr.mxu0 0.0
        %710 = vmatpush1.xpose.msra.mxu0 0.0
        %711 = vmatprep.subr.mxu0 0.0
        %712 = vmatpush1.xpose.msra.mxu0 0.0
        %713 = vmatprep.subr.mxu0 0.0
        %714 = vmatpush1.xpose.msra.mxu0 0.0
        %715 = vmatprep.subr.mxu0 0.0
        %716 = vmatpush1.xpose.msra.mxu0 0.0
        %717 = vmatprep.subr.mxu0 0.0
        %718 = vmatpush1.xpose.msra.mxu0 0.0
        %719 = vmatprep.subr.mxu0 0.0
        %720 = vmatpush1.xpose.msra.mxu0 0.0
        %721 = vmatprep.subr.mxu0 0.0
        %722 = vmatpush1.xpose.msra.mxu0 0.0
        %723 = vmatprep.subr.mxu0 0.0
        %724 = vmatpush1.xpose.msra.mxu0 0.0
        %725 = vmatprep.subr.mxu0 0.0
        %726 = vmatpush1.xpose.msra.mxu0 0.0
        %727 = vmatprep.subr.mxu0 0.0
        %728 = vmatpush1.xpose.msra.mxu0 0.0
        %729 = vmatprep.subr.mxu0 0.0
        %730 = vmatpush1.xpose.msra.mxu0 0.0
        %731 = vmatprep.subr.mxu0 0.0
        %732 = vmatpush1.xpose.msra.mxu0 0.0
        %733 = vmatprep.subr.mxu0 0.0
        %734 = vmatpush1.xpose.msra.mxu0 0.0
        %735 = vmatprep.mubr.f32.mxu0 0.0
        %736 = vmatmul.mubr.f32.gmra.mrb[0].mxu0 %v667
        %v737 = vpop.f32.mrb[0].mxu0
        %v738 = vadd.f32 0.0, %v737
        %v739 = vpop.f32.mrb[0].mxu0
        %740 = vdwg.mxu0
        %v741 = vsel %vm329, %v738, -inf
        %742 = vmax.xlane.f32.xlu0 %v741
        %v743 = vpop.xlane.xlu0 %742
        %v744 = vsub.f32 %v738, %v743
        %v745 = vmul.f32 %v744, 1.442695
        %v746 = vpow.pop %v745
        %v747 = vsel %vm329, %v746, 0.0
        %748 = vadd.xlane.f32.xlu0 %v747
        %v749 = vpop.xlane.xlu0 %748
        %v750 = vrcp.pop %v749
        %v751 = vmul.f32 %v746, %v750
        %752 = vrot.lane.b32.xlu0 %v323, 48
        %v753 = vpop.permute.xlu0 %752
        %v756 = vsel %vm329, %v751, 0
        %758 = vmatprep.subr.mxu0 0.0
        %759 = vmatpush1.msra.mxu0 %v753
        %760 = vmatprep.subr.mxu0 0.0
        %761 = vmatpush1.msra.mxu0 0.0
        %762 = vmatprep.subr.mxu0 0.0
        %763 = vmatpush1.msra.mxu0 0.0
        %764 = vmatprep.subr.mxu0 0.0
        %765 = vmatpush1.msra.mxu0 0.0
        %766 = vmatprep.subr.mxu0 0.0
        %767 = vmatpush1.msra.mxu0 0.0
        %768 = vmatprep.subr.mxu0 0.0
        %769 = vmatpush1.msra.mxu0 0.0
        %770 = vmatprep.subr.mxu0 0.0
        %771 = vmatpush1.msra.mxu0 0.0
        %772 = vmatprep.subr.mxu0 0.0
        %773 = vmatpush1.msra.mxu0 0.0
        %774 = vmatprep.subr.mxu0 0.0
        %775 = vmatpush1.msra.mxu0 0.0
        %776 = vmatprep.subr.mxu0 0.0
        %777 = vmatpush1.msra.mxu0 0.0
        %778 = vmatprep.subr.mxu0 0.0
        %779 = vmatpush1.msra.mxu0 0.0
        %780 = vmatprep.subr.mxu0 0.0
        %781 = vmatpush1.msra.mxu0 0.0
        %782 = vmatprep.subr.mxu0 0.0
        %783 = vmatpush1.msra.mxu0 0.0
        %784 = vmatprep.subr.mxu0 0.0
        %785 = vmatpush1.msra.mxu0 0.0
        %786 = vmatprep.subr.mxu0 0.0
        %787 = vmatpush1.msra.mxu0 0.0
        %788 = vmatprep.subr.mxu0 0.0
        %789 = vmatpush1.msra.mxu0 0.0
        %790 = vmatprep.subr.mxu0 0.0
        %791 = vmatpush1.msra.mxu0 0.0
        %792 = vmatprep.subr.mxu0 0.0
        %793 = vmatpush1.msra.mxu0 0.0
        %794 = vmatprep.subr.mxu0 0.0
        %795 = vmatpush1.msra.mxu0 0.0
        %796 = vmatprep.subr.mxu0 0.0
        %797 = vmatpush1.msra.mxu0 0.0
        %798 = vmatprep.subr.mxu0 0.0
        %799 = vmatpush1.msra.mxu0 0.0
        %800 = vmatprep.subr.mxu0 0.0
        %801 = vmatpush1.msra.mxu0 0.0
        %802 = vmatprep.subr.mxu0 0.0
        %803 = vmatpush1.msra.mxu0 0.0
        %804 = vmatprep.subr.mxu0 0.0
        %805 = vmatpush1.msra.mxu0 0.0
        %806 = vmatprep.subr.mxu0 0.0
        %807 = vmatpush1.msra.mxu0 0.0
        %808 = vmatprep.subr.mxu0 0.0
        %809 = vmatpush1.msra.mxu0 0.0
        %810 = vmatprep.subr.mxu0 0.0
        %811 = vmatpush1.msra.mxu0 0.0
        %812 = vmatprep.subr.mxu0 0.0
        %813 = vmatpush1.msra.mxu0 0.0
        %814 = vmatprep.subr.mxu0 0.0
        %815 = vmatpush1.msra.mxu0 0.0
        %816 = vmatprep.subr.mxu0 0.0
        %817 = vmatpush1.msra.mxu0 0.0
        %818 = vmatprep.subr.mxu0 0.0
        %819 = vmatpush1.msra.mxu0 0.0
        %820 = vmatprep.subr.mxu0 0.0
        %821 = vmatpush1.msra.mxu0 0.0
        %822 = vmatprep.mubr.f32.mxu0 0.0
        %823 = vmatmul.mubr.f32.gmra.mrb[0].mxu0 %v756
        %v824 = vpop.f32.mrb[0].mxu0
        %v825 = vadd.f32 0.0, %v824
        %v826 = vpop.f32.mrb[0].mxu0
        %827 = vdwg.mxu0
        %829 = vrot.lane.b32.xlu0 %v825, 16
        %v830 = vpop.permute.xlu0 %829
        %vm832 = vcmask 195712
        %833 = vst.msk [vmem:[#allocation2] sm:$0xff] %vm832, %v830
        %834 = vrot.lane.b32.xlu0 %v323, 104
        %v835 = vpop.permute.xlu0 %834
        %836 = vrot.lane.b32.xlu0 %v323, 72
        %v837 = vpop.permute.xlu0 %836
        %v838 = vsel %vm329, %v835, 0
        %v840 = vsel %vm329, %v837, 0
        %842 = vmatprep.subr.mxu0 0.0
        %843 = vmatpush1.xpose.msra.mxu0 %v840
        %844 = vmatprep.subr.mxu0 0.0
        %845 = vmatpush1.xpose.msra.mxu0 0.0
        %846 = vmatprep.subr.mxu0 0.0
        %847 = vmatpush1.xpose.msra.mxu0 0.0
        %848 = vmatprep.subr.mxu0 0.0
        %849 = vmatpush1.xpose.msra.mxu0 0.0
        %850 = vmatprep.subr.mxu0 0.0
        %851 = vmatpush1.xpose.msra.mxu0 0.0
        %852 = vmatprep.subr.mxu0 0.0
        %853 = vmatpush1.xpose.msra.mxu0 0.0
        %854 = vmatprep.subr.mxu0 0.0
        %855 = vmatpush1.xpose.msra.mxu0 0.0
        %856 = vmatprep.subr.mxu0 0.0
        %857 = vmatpush1.xpose.msra.mxu0 0.0
        %858 = vmatprep.subr.mxu0 0.0
        %859 = vmatpush1.xpose.msra.mxu0 0.0
        %860 = vmatprep.subr.mxu0 0.0
        %861 = vmatpush1.xpose.msra.mxu0 0.0
        %862 = vmatprep.subr.mxu0 0.0
        %863 = vmatpush1.xpose.msra.mxu0 0.0
        %864 = vmatprep.subr.mxu0 0.0
        %865 = vmatpush1.xpose.msra.mxu0 0.0
        %866 = vmatprep.subr.mxu0 0.0
        %867 = vmatpush1.xpose.msra.mxu0 0.0
        %868 = vmatprep.subr.mxu0 0.0
        %869 = vmatpush1.xpose.msra.mxu0 0.0
        %870 = vmatprep.subr.mxu0 0.0
        %871 = vmatpush1.xpose.msra.mxu0 0.0
        %872 = vmatprep.subr.mxu0 0.0
        %873 = vmatpush1.xpose.msra.mxu0 0.0
        %874 = vmatprep.subr.mxu0 0.0
        %875 = vmatpush1.xpose.msra.mxu0 0.0
        %876 = vmatprep.subr.mxu0 0.0
        %877 = vmatpush1.xpose.msra.mxu0 0.0
        %878 = vmatprep.subr.mxu0 0.0
        %879 = vmatpush1.xpose.msra.mxu0 0.0
        %880 = vmatprep.subr.mxu0 0.0
        %881 = vmatpush1.xpose.msra.mxu0 0.0
        %882 = vmatprep.subr.mxu0 0.0
        %883 = vmatpush1.xpose.msra.mxu0 0.0
        %884 = vmatprep.subr.mxu0 0.0
        %885 = vmatpush1.xpose.msra.mxu0 0.0
        %886 = vmatprep.subr.mxu0 0.0
        %887 = vmatpush1.xpose.msra.mxu0 0.0
        %888 = vmatprep.subr.mxu0 0.0
        %889 = vmatpush1.xpose.msra.mxu0 0.0
        %890 = vmatprep.subr.mxu0 0.0
        %891 = vmatpush1.xpose.msra.mxu0 0.0
        %892 = vmatprep.subr.mxu0 0.0
        %893 = vmatpush1.xpose.msra.mxu0 0.0
        %894 = vmatprep.subr.mxu0 0.0
        %895 = vmatpush1.xpose.msra.mxu0 0.0
        %896 = vmatprep.subr.mxu0 0.0
        %897 = vmatpush1.xpose.msra.mxu0 0.0
        %898 = vmatprep.subr.mxu0 0.0
        %899 = vmatpush1.xpose.msra.mxu0 0.0
        %900 = vmatprep.subr.mxu0 0.0
        %901 = vmatpush1.xpose.msra.mxu0 0.0
        %902 = vmatprep.subr.mxu0 0.0
        %903 = vmatpush1.xpose.msra.mxu0 0.0
        %904 = vmatprep.subr.mxu0 0.0
        %905 = vmatpush1.xpose.msra.mxu0 0.0
        %906 = vmatprep.mubr.f32.mxu0 0.0
        %907 = vmatmul.mubr.f32.gmra.mrb[0].mxu0 %v838
        %v908 = vpop.f32.mrb[0].mxu0
        %v909 = vadd.f32 0.0, %v908
        %v910 = vpop.f32.mrb[0].mxu0
        %911 = vdwg.mxu0
        %v912 = vsel %vm329, %v909, -inf
        %913 = vmax.xlane.f32.xlu0 %v912
        %v914 = vpop.xlane.xlu0 %913
        %v915 = vsub.f32 %v909, %v914
        %v916 = vmul.f32 %v915, 1.442695
        %v917 = vpow.pop %v916
        %v918 = vsel %vm329, %v917, 0.0
        %919 = vadd.xlane.f32.xlu0 %v918
        %v920 = vpop.xlane.xlu0 %919
        %v921 = vrcp.pop %v920
        %v922 = vmul.f32 %v917, %v921
        %923 = vrot.lane.b32.xlu0 %v323, 40
        %v924 = vpop.permute.xlu0 %923
        %v927 = vsel %vm329, %v922, 0
        %929 = vmatprep.subr.mxu0 0.0
        %930 = vmatpush1.msra.mxu0 %v924
        %931 = vmatprep.subr.mxu0 0.0
        %932 = vmatpush1.msra.mxu0 0.0
        %933 = vmatprep.subr.mxu0 0.0
        %934 = vmatpush1.msra.mxu0 0.0
        %935 = vmatprep.subr.mxu0 0.0
        %936 = vmatpush1.msra.mxu0 0.0
        %937 = vmatprep.subr.mxu0 0.0
        %938 = vmatpush1.msra.mxu0 0.0
        %939 = vmatprep.subr.mxu0 0.0
        %940 = vmatpush1.msra.mxu0 0.0
        %941 = vmatprep.subr.mxu0 0.0
        %942 = vmatpush1.msra.mxu0 0.0
        %943 = vmatprep.subr.mxu0 0.0
        %944 = vmatpush1.msra.mxu0 0.0
        %945 = vmatprep.subr.mxu0 0.0
        %946 = vmatpush1.msra.mxu0 0.0
        %947 = vmatprep.subr.mxu0 0.0
        %948 = vmatpush1.msra.mxu0 0.0
        %949 = vmatprep.subr.mxu0 0.0
        %950 = vmatpush1.msra.mxu0 0.0
        %951 = vmatprep.subr.mxu0 0.0
        %952 = vmatpush1.msra.mxu0 0.0
        %953 = vmatprep.subr.mxu0 0.0
        %954 = vmatpush1.msra.mxu0 0.0
        %955 = vmatprep.subr.mxu0 0.0
        %956 = vmatpush1.msra.mxu0 0.0
        %957 = vmatprep.subr.mxu0 0.0
        %958 = vmatpush1.msra.mxu0 0.0
        %959 = vmatprep.subr.mxu0 0.0
        %960 = vmatpush1.msra.mxu0 0.0
        %961 = vmatprep.subr.mxu0 0.0
        %962 = vmatpush1.msra.mxu0 0.0
        %963 = vmatprep.subr.mxu0 0.0
        %964 = vmatpush1.msra.mxu0 0.0
        %965 = vmatprep.subr.mxu0 0.0
        %966 = vmatpush1.msra.mxu0 0.0
        %967 = vmatprep.subr.mxu0 0.0
        %968 = vmatpush1.msra.mxu0 0.0
        %969 = vmatprep.subr.mxu0 0.0
        %970 = vmatpush1.msra.mxu0 0.0
        %971 = vmatprep.subr.mxu0 0.0
        %972 = vmatpush1.msra.mxu0 0.0
        %973 = vmatprep.subr.mxu0 0.0
        %974 = vmatpush1.msra.mxu0 0.0
        %975 = vmatprep.subr.mxu0 0.0
        %976 = vmatpush1.msra.mxu0 0.0
        %977 = vmatprep.subr.mxu0 0.0
        %978 = vmatpush1.msra.mxu0 0.0
        %979 = vmatprep.subr.mxu0 0.0
        %980 = vmatpush1.msra.mxu0 0.0
        %981 = vmatprep.subr.mxu0 0.0
        %982 = vmatpush1.msra.mxu0 0.0
        %983 = vmatprep.subr.mxu0 0.0
        %984 = vmatpush1.msra.mxu0 0.0
        %985 = vmatprep.subr.mxu0 0.0
        %986 = vmatpush1.msra.mxu0 0.0
        %987 = vmatprep.subr.mxu0 0.0
        %988 = vmatpush1.msra.mxu0 0.0
        %989 = vmatprep.subr.mxu0 0.0
        %990 = vmatpush1.msra.mxu0 0.0
        %991 = vmatprep.subr.mxu0 0.0
        %992 = vmatpush1.msra.mxu0 0.0
        %993 = vmatprep.mubr.f32.mxu0 0.0
        %994 = vmatmul.mubr.f32.gmra.mrb[0].mxu0 %v927
        %v995 = vpop.f32.mrb[0].mxu0
        %v996 = vadd.f32 0.0, %v995
        %v997 = vpop.f32.mrb[0].mxu0
        %998 = vdwg.mxu0
        %1000 = vrot.lane.b32.xlu0 %v996, 24
        %v1001 = vpop.permute.xlu0 %1000
        %vm1003 = vcmask 261312
        %1004 = vst.msk [vmem:[#allocation2] sm:$0xff] %vm1003, %v1001
        %v1005 = vld [vmem:[#allocation2] sm:$0xff]
        %v1007 = vlaneseq
        %v1008 = vshrl.u32 %v1007, 7
        %v1009 = vsub.s32 0, %v1008
        %v1010 = vrot.slane %v251, %v1009
        %v1013 = vsel %vm252, %v1005, 0
        %1015 = vmatprep.subr.mxu0 0.0
        %1016 = vmatpush1.msra.mxu0 %v247
        %1017 = vmatprep.subr.mxu0 0.0
        %1018 = vmatpush1.msra.mxu0 %v248
        %1019 = vmatprep.subr.mxu0 0.0
        %1020 = vmatpush1.msra.mxu0 %v249
        %1021 = vmatprep.subr.mxu0 0.0
        %1022 = vmatpush1.msra.mxu0 %v250
        %1023 = vmatprep.subr.mxu0 0.0
        %1024 = vmatpush1.msra.mxu0 0.0
        %1025 = vmatprep.subr.mxu0 0.0
        %1026 = vmatpush1.msra.mxu0 0.0
        %1027 = vmatprep.subr.mxu0 0.0
        %1028 = vmatpush1.msra.mxu0 0.0
        %1029 = vmatprep.subr.mxu0 0.0
        %1030 = vmatpush1.msra.mxu0 0.0
        %1031 = vmatprep.subr.mxu0 0.0
        %1032 = vmatpush1.msra.mxu0 0.0
        %1033 = vmatprep.subr.mxu0 0.0
        %1034 = vmatpush1.msra.mxu0 0.0
        %1035 = vmatprep.subr.mxu0 0.0
        %1036 = vmatpush1.msra.mxu0 0.0
        %1037 = vmatprep.subr.mxu0 0.0
        %1038 = vmatpush1.msra.mxu0 0.0
        %1039 = vmatprep.subr.mxu0 0.0
        %1040 = vmatpush1.msra.mxu0 0.0
        %1041 = vmatprep.subr.mxu0 0.0
        %1042 = vmatpush1.msra.mxu0 0.0
        %1043 = vmatprep.subr.mxu0 0.0
        %1044 = vmatpush1.msra.mxu0 0.0
        %1045 = vmatprep.subr.mxu0 0.0
        %1046 = vmatpush1.msra.mxu0 0.0
        %1047 = vmatprep.subr.mxu0 0.0
        %1048 = vmatpush1.msra.mxu0 0.0
        %1049 = vmatprep.subr.mxu0 0.0
        %1050 = vmatpush1.msra.mxu0 0.0
        %1051 = vmatprep.subr.mxu0 0.0
        %1052 = vmatpush1.msra.mxu0 0.0
        %1053 = vmatprep.subr.mxu0 0.0
        %1054 = vmatpush1.msra.mxu0 0.0
        %1055 = vmatprep.subr.mxu0 0.0
        %1056 = vmatpush1.msra.mxu0 0.0
        %1057 = vmatprep.subr.mxu0 0.0
        %1058 = vmatpush1.msra.mxu0 0.0
        %1059 = vmatprep.subr.mxu0 0.0
        %1060 = vmatpush1.msra.mxu0 0.0
        %1061 = vmatprep.subr.mxu0 0.0
        %1062 = vmatpush1.msra.mxu0 0.0
        %1063 = vmatprep.subr.mxu0 0.0
        %1064 = vmatpush1.msra.mxu0 0.0
        %1065 = vmatprep.subr.mxu0 0.0
        %1066 = vmatpush1.msra.mxu0 0.0
        %1067 = vmatprep.subr.mxu0 0.0
        %1068 = vmatpush1.msra.mxu0 0.0
        %1069 = vmatprep.subr.mxu0 0.0
        %1070 = vmatpush1.msra.mxu0 0.0
        %1071 = vmatprep.subr.mxu0 0.0
        %1072 = vmatpush1.msra.mxu0 0.0
        %1073 = vmatprep.subr.mxu0 0.0
        %1074 = vmatpush1.msra.mxu0 0.0
        %1075 = vmatprep.subr.mxu0 0.0
        %1076 = vmatpush1.msra.mxu0 0.0
        %1077 = vmatprep.subr.mxu0 0.0
        %1078 = vmatpush1.msra.mxu0 0.0
        %1079 = vmatprep.mubr.f32.mxu0 0.0
        %1080 = vmatmul.mubr.f32.gmra.mrb[0].mxu0 %v1013
        %v1081 = vpop.f32.mrb[0].mxu0
        %v1082 = vadd.f32 %v1010, %v1081
        %v1083 = vpop.f32.mrb[0].mxu0
        %1084 = vdwg.mxu0
        %1085 = vst.msk [vmem:[%s241] sm:$0xff] %vm252, %v1082
        %s1086 = sand.u32 %s119, 1
        %s1087 = scalar_lea.sflag [#allocation5], %s1086
        %s1088 = sand.u32 %s119, 1
        %s1089 = smul.addr %s1088, 8
        %s1090 = scalar_lea.vmem [#allocation9], %s1089
        // Predicated region
        $region49: #{tpu_custom_call.1} parent=35 // pred_check
          %p1091 = pneg %p129
        $region50: #{tpu_custom_call.1} parent=35 // pred_check_branch
          %1093 = sbr.rel (%p1091) target = $region52
        $region51: #{tpu_custom_call.1} parent=35 // pred_region
          %s1095 = ssub.s32 128, 128
          %1096 = vsyncadd %s1087, %s1095
          %s1097 = smul.addr %s22, 128
          %s1098 = scalar_lea.hbm %s4, %s1097
          %s1100 = sshll.u32 %s1090, 4
          %s1101 = int_to_ptr.vmem [resolvable:$true] %s1100
          %1103 = dma.vmem_to_hbm [thread:$0]  %s1101, 128, %s1098, %s1087
        $region52: #{tpu_custom_call.1} parent=35 // pred_fallthru
          _
      $region36: #{tpu_custom_call.1} parent=5 // pred_fallthru
        _
      %p1104 = scmp.le.s32.totalorder 2, %s17
      // Predicated region
      $region53: #{tpu_custom_call.1} parent=5 // pred_check
        %p1105 = pneg %p1104
      $region54: #{tpu_custom_call.1} parent=5 // pred_check_branch
        %1107 = sbr.rel (%p1105) target = $region56
      $region55: #{tpu_custom_call.1} parent=5 // pred_region
        %s1108 = ssub.s32 %s17, 2
        // Predicated region
        $region57: #{tpu_custom_call.1} parent=55 // pred_check
          %p1109 = pneg %p135
        $region58: #{tpu_custom_call.1} parent=55 // pred_check_branch
          %1111 = sbr.rel (%p1109) target = $region60
        $region59: #{tpu_custom_call.1} parent=55 // pred_region
          %s1112 = sand.u32 %s120, 1
          %s1113 = scalar_lea.sflag [#allocation5], %s1112
          %s1114 = sand.u32 %s120, 1
          %s1115 = smul.addr %s1114, 8
          %s1116 = scalar_lea.vmem [#allocation9], %s1115
          %1117 = dma.done %s1113, 128
        $region60: #{tpu_custom_call.1} parent=55 // pred_fallthru
          _
      $region56: #{tpu_custom_call.1} parent=5 // pred_fallthru
        _
    $region6: #{tpu_custom_call.1} parent=1 // loop_footer
      %s21 = sadd.s32 1, %s17
    $region7: #{tpu_custom_call.1} parent=1 // loop_footer_branch
      %16 = sbr.rel target = $region3
    $region8: #{tpu_custom_call.1} parent=1 // loop_exit
      _
    %1118 = vsyncpa [#allocation4], 1
    %s1119 = scalar_lea.sflag [#allocation4], 1
    %1120 = vsyncpa %s1119, 1
    %1121 = vsyncpa [#allocation7], 1
    %1122 = vsyncpa [#allocation5], 1
    %s1123 = scalar_lea.sflag [#allocation5], 1
    %1124 = vsyncpa %s1123, 1

</llo_original>
